<compile_context>
chip_gen: v6e
topology: v6e:2x2x1
jax: 0.10.0
libtpu: 0.0.40
codegen_flags: <defaults>
</compile_context>

<pallas_src>
import numpy as np
import jax
import jax.numpy as jnp
from jax.experimental import pallas as pl
from jax.experimental.pallas import tpu as pltpu

EPS = 1e-3
LEVEL_LIST = [20, 256, 4096]
LEVEL_MAP = {20: [4, 5], 256: [4, 4, 4, 4], 4096: [4, 4, 4, 4, 4, 4]}
N_LEVELS = len(LEVEL_LIST)
VQ_DIM = 10
D_PACK = N_LEVELS * VQ_DIM          # 30: level i's FSQ dims live in lanes [10i, 10i+d_i)

BT_CAP = 2048                       # batch-tile cap (fits all generations' VMEM easily)
VMEM_LIMIT_BYTES = 48 * 1024 * 1024


# ----------------------------- constants (width-30 packed) -----------------------------

def _fsq_constants():
    """Per-lane FSQ constants, packed into the width-30 layout (zeros in pad lanes)."""
    z = lambda: np.zeros((D_PACK,), np.float64)
    half_l, offset, inv_hw, hw, basis, shift, lo, hi = (z() for _ in range(8))
    for i, level in enumerate(LEVEL_LIST):
        lv = np.asarray(LEVEL_MAP[level], dtype=np.float64)
        d = len(lv)
        s = i * VQ_DIM
        hl = (lv - 1.0) * (1.0 - EPS) / 2.0
        off = np.where(lv % 2 == 1, 0.0, 0.5)
        hwv = (lv.astype(np.int64) // 2).astype(np.float64)
        bas = np.concatenate(([1], np.cumprod(lv[:-1].astype(np.int64)))).astype(np.float64)
        half_l[s:s + d] = hl
        offset[s:s + d] = off
        inv_hw[s:s + d] = 1.0 / hwv
        hw[s:s + d] = hwv
        basis[s:s + d] = bas
        shift[s:s + d] = np.tan(off / hl)        # matches the PyTorch source (np.tan)
        lo[s:s + VQ_DIM] = i / N_LEVELS
        hi[s:s + VQ_DIM] = (i + 1) / N_LEVELS
    return dict(half_l=half_l, offset=offset, inv_hw=inv_hw, hw=hw,
                basis=basis, shift=shift, lo=lo, hi=hi)


# ------------------------------------ the kernel ---------------------------------------

def fsq_hier_kernel(h_ref, p_ref, cmat_ref, encw_ref, redw_ref,
                    w1_ref, w2_ref, w3_ref, decw_ref,
                    out_q_ref, out_code_ref):
    f32 = jnp.float32
    h = h_ref[...].astype(f32)                    # (bt, E)
    p = p_ref[...].astype(f32)                    # (bt, 1)
    c = cmat_ref[...]                             # (11, Cmax) consolidated consts/biases

    D = D_PACK
    H3 = w1_ref.shape[1]
    E = out_q_ref.shape[1]

    encb   = c[0:1, :D]
    half_l = c[1:2, :D]
    offset = c[2:3, :D]
    inv_hw = c[3:4, :D]
    hw     = c[4:5, :D]
    lo30   = c[5:6, :D]
    hi30   = c[6:7, :D]
    b1     = c[7:8, :H3]
    b2     = c[8:9, :H3]
    b3     = c[9:10, :D]
    decb   = c[10:11, :E]

    # Per-row level selection over the three packed 10-lane groups (strict lo < p <= hi).
    sel = jnp.logical_and(lo30 < p, p <= hi30).astype(f32)            # (bt, 30)

    # ---- FSQ: enc projection (3 levels fused, tan-shift folded into bias) ----
    z = jnp.dot(h, encw_ref[...], preferred_element_type=f32) + encb   # (bt, 30)
    bounded = jnp.tanh(z) * half_l - offset
    rounded = jnp.round(bounded)                                       # integer-valued f32
    quantized = rounded * inv_hw                                       # (bt, 30)

    # ---- codes_to_indexes on the selected level (MXU column reduce, exact) ----
    zhat = (rounded + hw) * sel                                        # (bt, 30)
    code_f = jnp.dot(zhat, redw_ref[:, 0:1], preferred_element_type=f32)  # (bt, 1)
    out_code_ref[...] = jnp.round(code_f).astype(jnp.int32)

    # ---- condition MLPs, fused via block-diagonal weights (BN folded) ----
    x = jnp.dot(quantized, w1_ref[...], preferred_element_type=f32) + b1
    x = jnp.maximum(x, 0.0)
    x = jnp.dot(x, w2_ref[...], preferred_element_type=f32) + b2
    x = jnp.maximum(x, 0.0)
    x = jnp.dot(x, w3_ref[...], preferred_element_type=f32) + b3       # (bt, 30)

    # ---- L2-normalize the selected level's 10-dim feature (exact math) ----
    xsel = x * sel                                                     # (bt, 30)
    sumsq = jnp.dot(xsel * x, redw_ref[:, 1:2], preferred_element_type=f32)  # (bt, 1)
    inv_n = 1.0 / (jnp.sqrt(sumsq) + 1e-6)                             # x / (||x|| + 1e-6)
    feat = xsel * inv_n                                                # (bt, 30)

    # ---- dec: the stacked (30, E) weight also performs the 3-level hierarchy sum ----
    out = jnp.dot(feat, decw_ref[...], preferred_element_type=f32) + decb
    out_q_ref[...] = out.astype(out_q_ref.dtype)


# ------------------------------------ the wrapper --------------------------------------

def _choose_batch_tile(B):
    if B > BT_CAP:
        return BT_CAP
    if B >= 32:
        # >= 2 grid steps so the "parallel" batch axis shards across v7x's two TCs.
        bt = (B + 1) // 2
        return min(BT_CAP, ((bt + 7) // 8) * 8)
    return B                                    # tiny batches: one full-batch tile


def fsq_hier_forward(h_in, p, packed):
    B, E = h_in.shape
    bt = _choose_batch_tile(B)
    grid = (pl.cdiv(B, bt),)

    def row_spec(shape):
        return pl.BlockSpec(shape, lambda i: (i, 0))

    def rep_spec(arr):
        return pl.BlockSpec(arr.shape, lambda i: (0, 0))

    weights = [packed["cmat"], packed["encW"], packed["redW"],
               packed["W1"], packed["W2"], packed["W3"], packed["decW"]]

    out_q, out_code = pl.pallas_call(
        fsq_hier_kernel,
        grid=grid,
        in_specs=[row_spec((bt, E)), row_spec((bt, 1))] + [rep_spec(w) for w in weights],
        out_specs=(row_spec((bt, E)), row_spec((bt, 1))),
        out_shape=(jax.ShapeDtypeStruct((B, E), h_in.dtype),
                   jax.ShapeDtypeStruct((B, 1), jnp.int32)),
        compiler_params=pltpu.CompilerParams(
            dimension_semantics=("parallel",),
            vmem_limit_bytes=VMEM_LIMIT_BYTES),
    )(h_in, p.reshape(B, 1).astype(jnp.float32), *weights)
    return out_q, out_code[:, 0]


# ----------------------- wrapper-side parameter packing --------------------------------

def _fold_bn(w, b, gamma, beta, mean, var, bn_eps=1e-5):
    """Fold eval-mode BatchNorm1d into the preceding Linear (y = xW + b)."""
    a = gamma / jnp.sqrt(var + bn_eps)
    return w * a[None, :], (b - mean) * a + beta


def init_params(key, embedding_dim, hidden_dim):
    """Deterministic synthetic params, pre-consolidated into fused width-30 slabs.

    Matches FSQHier(levels=[20,256,4096], embedding_dim, condition_layer=3) with
    BatchNorm folded in eval mode; the condition hidden dim equals embedding_dim
    in the original module (hidden_dim should be set to embedding_dim).
    """
    E, H = embedding_dim, hidden_dim
    H3 = N_LEVELS * H
    CMAX = max(D_PACK, H3, E)
    cs = _fsq_constants()

    keys = jax.random.split(key, 64)
    k = 0

    def nrm(shape, scale=0.1):
        nonlocal k
        out = scale * jax.random.normal(keys[k], shape, jnp.float32)
        k += 1
        return out

    encW = jnp.zeros((E, D_PACK), jnp.float32)
    encB = jnp.zeros((D_PACK,), jnp.float32)
    W1 = jnp.zeros((D_PACK, H3), jnp.float32)
    W2 = jnp.zeros((H3, H3), jnp.float32)
    W3 = jnp.zeros((H3, D_PACK), jnp.float32)
    B1 = jnp.zeros((H3,), jnp.float32)
    B2 = jnp.zeros((H3,), jnp.float32)
    B3 = jnp.zeros((D_PACK,), jnp.float32)

    for i, level in enumerate(LEVEL_LIST):
        d = len(LEVEL_MAP[level])
        s = i * VQ_DIM
        hs = i * H

        encW = encW.at[:, s:s + d].set(nrm((E, d)))
        encB = encB.at[s:s + d].set(nrm((d,)))

        # condition block 1: Linear(d, H) + BN(H) + ReLU (BN folded)
        w1, b1 = nrm((d, H)), nrm((H,))
        g1, be1 = 1.0 + nrm((H,)), nrm((H,))
        m1, v1 = nrm((H,)), 1.0 + jnp.abs(nrm((H,)))
        fw1, fb1 = _fold_bn(w1, b1, g1, be1, m1, v1)
        W1 = W1.at[s:s + d, hs:hs + H].set(fw1)
        B1 = B1.at[hs:hs + H].set(fb1)

        # condition block 2: Linear(H, H) + BN(H) + ReLU (BN folded)
        w2, b2 = nrm((H, H)), nrm((H,))
        g2, be2 = 1.0 + nrm((H,)), nrm((H,))
        m2, v2 = nrm((H,)), 1.0 + jnp.abs(nrm((H,)))
        fw2, fb2 = _fold_bn(w2, b2, g2, be2, m2, v2)
        W2 = W2.at[hs:hs + H, hs:hs + H].set(fw2)
        B2 = B2.at[hs:hs + H].set(fb2)

        # condition output: Linear(H, 10)
        W3 = W3.at[hs:hs + H, s:s + VQ_DIM].set(nrm((H, VQ_DIM)))
        B3 = B3.at[s:s + VQ_DIM].set(nrm((VQ_DIM,)))

    # shared dec Linear(10, E); stacked 3x so one matmul does the hierarchy sum.
    decw = nrm((VQ_DIM, E))
    decb = nrm((E,))
    decW = jnp.concatenate([decw] * N_LEVELS, axis=0)           # (30, E)

    # Consolidated constant / bias slab: one (11, CMAX) f32 array.
    def row(v, width):
        out = np.zeros((CMAX,), np.float32)
        out[:width] = np.asarray(v, np.float32)[:width]
        return out

    cmat = np.stack([
        row(np.asarray(encB) + cs["shift"], D_PACK),     # 0: enc bias (+ tan shift)
        row(cs["half_l"], D_PACK),                       # 1
        row(cs["offset"], D_PACK),                       # 2
        row(cs["inv_hw"], D_PACK),                       # 3
        row(cs["hw"], D_PACK),                           # 4
        row(cs["lo"], D_PACK),                           # 5
        row(cs["hi"], D_PACK),                           # 6
        row(np.asarray(B1), H3),                         # 7
        row(np.asarray(B2), H3),                         # 8
        row(np.asarray(B3), D_PACK),                     # 9
        row(np.asarray(decb), E),                        # 10
    ]).astype(np.float32)

    # (30, 2) reduction columns: col 0 = mixed-radix basis (code), col 1 = ones (sumsq).
    redW = np.stack([cs["basis"], np.ones((D_PACK,))], axis=1).astype(np.float32)

    return dict(cmat=jnp.asarray(cmat), encW=encW, redW=jnp.asarray(redW),
                W1=W1, W2=W2, W3=W3, decW=decW)


# ------------------------------ pure-JAX reference check --------------------------------

def _jnp_reference(h_in, p, packed):
    """Same math as the kernel, in plain jnp (sanity check of the Pallas mechanics)."""
    f32 = jnp.float32
    hp = jnp.asarray(h_in, f32)
    pp = p.reshape(-1, 1).astype(f32)
    c = packed["cmat"]
    D = D_PACK
    H3 = packed["W1"].shape[1]
    E = h_in.shape[1]
    prec = jax.lax.Precision.HIGHEST

    encb, half_l, offset, inv_hw, hw, lo, hi = (c[i, :D] for i in range(7))
    b1, b2, b3, decb = c[7, :H3], c[8, :H3], c[9, :D], c[10, :E]

    sel = ((lo[None, :] < pp) & (pp <= hi[None, :])).astype(f32)
    z = jnp.dot(hp, packed["encW"], precision=prec) + encb
    rounded = jnp.round(jnp.tanh(z) * half_l - offset)
    quantized = rounded * inv_hw
    code = jnp.sum((rounded + hw) * sel * packed["redW"][:, 0][None, :], axis=-1)

    x = jax.nn.relu(jnp.dot(quantized, packed["W1"], precision=prec) + b1)
    x = jax.nn.relu(jnp.dot(x, packed["W2"], precision=prec) + b2)
    x = jnp.dot(x, packed["W3"], precision=prec) + b3
    xsel = x * sel
    sumsq = jnp.sum(xsel * x, axis=-1, keepdims=True)
    feat = xsel / (jnp.sqrt(sumsq) + 1e-6)
    q = jnp.dot(feat, packed["decW"], precision=prec) + decb
    return q, jnp.round(code).astype(jnp.int32)


if __name__ == "__main__":
    B, E = 8, 32                     # batch, embedding_dim (condition hidden == E)
    key = jax.random.PRNGKey(0)
    k_h, k_p, k_w = jax.random.split(key, 3)

    h_in = jax.random.normal(k_h, (B, E), jnp.float32)
    p = jax.random.uniform(k_p, (B,), jnp.float32)      # replaces torch.rand
    packed = init_params(k_w, E, E)

    out_q, out_code = fsq_hier_forward(h_in, p, packed)
    jax.block_until_ready((out_q, out_code))

    assert out_q.shape == (B, E) and out_code.shape == (B,)
    assert out_q.dtype == jnp.float32 and out_code.dtype == jnp.int32

    ref_q, ref_code = _jnp_reference(h_in, p, packed)
    assert bool(jnp.all(out_code == ref_code))
    assert bool(jnp.allclose(out_q, ref_q, atol=5e-2, rtol=5e-2))

    print("KERNEL_OK")
</pallas_src>

<mosaic_0001>
module attributes {stable_mosaic.version = 11 : i64} {
  func.func @fsq_hier_kernel(%arg0: i32, %arg1: memref<8x32xf32, #tpu.memory_space<vmem>>, %arg2: memref<8x1xf32, #tpu.memory_space<vmem>>, %arg3: memref<11x96xf32, #tpu.memory_space<vmem>>, %arg4: memref<32x30xf32, #tpu.memory_space<vmem>>, %arg5: memref<30x2xf32, #tpu.memory_space<vmem>>, %arg6: memref<30x96xf32, #tpu.memory_space<vmem>>, %arg7: memref<96x96xf32, #tpu.memory_space<vmem>>, %arg8: memref<96x30xf32, #tpu.memory_space<vmem>>, %arg9: memref<30x32xf32, #tpu.memory_space<vmem>>, %arg10: memref<8x32xf32, #tpu.memory_space<vmem>>, %arg11: memref<8x1xi32, #tpu.memory_space<vmem>>) attributes {dimension_semantics = [#tpu.dimension_semantics<parallel>], iteration_bounds = array<i64: 1>, scalar_prefetch = 0 : i64, scratch_operands = 0 : i64, tpu.core_type = #tpu.core_type<tc>, window_params = [{transform_indices = @transform_0, window_bounds = array<i64: 8, 32>}, {transform_indices = @transform_1, window_bounds = array<i64: 8, 1>}, {pipeline_mode = #tpu.pipeline_mode<synchronous>, transform_indices = @transform_2, window_bounds = array<i64: 11, 96>}, {pipeline_mode = #tpu.pipeline_mode<synchronous>, transform_indices = @transform_3, window_bounds = array<i64: 32, 30>}, {pipeline_mode = #tpu.pipeline_mode<synchronous>, transform_indices = @transform_4, window_bounds = array<i64: 30, 2>}, {pipeline_mode = #tpu.pipeline_mode<synchronous>, transform_indices = @transform_5, window_bounds = array<i64: 30, 96>}, {pipeline_mode = #tpu.pipeline_mode<synchronous>, transform_indices = @transform_6, window_bounds = array<i64: 96, 96>}, {pipeline_mode = #tpu.pipeline_mode<synchronous>, transform_indices = @transform_7, window_bounds = array<i64: 96, 30>}, {pipeline_mode = #tpu.pipeline_mode<synchronous>, transform_indices = @transform_8, window_bounds = array<i64: 30, 32>}, {transform_indices = @transform_9, window_bounds = array<i64: 8, 32>}, {transform_indices = @transform_10, window_bounds = array<i64: 8, 1>}]} {
    %c0 = arith.constant 0 : index
    %c0_0 = arith.constant 0 : index
    %0 = vector.load %arg1[%c0, %c0_0] : memref<8x32xf32, #tpu.memory_space<vmem>>, vector<8x32xf32>
    %c0_1 = arith.constant 0 : index
    %c0_2 = arith.constant 0 : index
    %1 = vector.load %arg2[%c0_1, %c0_2] : memref<8x1xf32, #tpu.memory_space<vmem>>, vector<8x1xf32>
    %c0_3 = arith.constant 0 : index
    %c0_4 = arith.constant 0 : index
    %2 = vector.load %arg3[%c0_3, %c0_4] : memref<11x96xf32, #tpu.memory_space<vmem>>, vector<11x96xf32>
    %3 = vector.extract_strided_slice %2 {offsets = [0, 0], sizes = [1, 30], strides = [1, 1]} : vector<11x96xf32> to vector<1x30xf32>
    %4 = vector.extract_strided_slice %2 {offsets = [1, 0], sizes = [1, 30], strides = [1, 1]} : vector<11x96xf32> to vector<1x30xf32>
    %5 = vector.extract_strided_slice %2 {offsets = [2, 0], sizes = [1, 30], strides = [1, 1]} : vector<11x96xf32> to vector<1x30xf32>
    %6 = vector.extract_strided_slice %2 {offsets = [3, 0], sizes = [1, 30], strides = [1, 1]} : vector<11x96xf32> to vector<1x30xf32>
    %7 = vector.extract_strided_slice %2 {offsets = [4, 0], sizes = [1, 30], strides = [1, 1]} : vector<11x96xf32> to vector<1x30xf32>
    %8 = vector.extract_strided_slice %2 {offsets = [5, 0], sizes = [1, 30], strides = [1, 1]} : vector<11x96xf32> to vector<1x30xf32>
    %9 = vector.extract_strided_slice %2 {offsets = [6, 0], sizes = [1, 30], strides = [1, 1]} : vector<11x96xf32> to vector<1x30xf32>
    %10 = vector.extract_strided_slice %2 {offsets = [7, 0], sizes = [1, 96], strides = [1, 1]} : vector<11x96xf32> to vector<1x96xf32>
    %11 = vector.extract_strided_slice %2 {offsets = [8, 0], sizes = [1, 96], strides = [1, 1]} : vector<11x96xf32> to vector<1x96xf32>
    %12 = vector.extract_strided_slice %2 {offsets = [9, 0], sizes = [1, 30], strides = [1, 1]} : vector<11x96xf32> to vector<1x30xf32>
    %13 = vector.extract_strided_slice %2 {offsets = [10, 0], sizes = [1, 32], strides = [1, 1]} : vector<11x96xf32> to vector<1x32xf32>
    %14 = vector.broadcast %8 : vector<1x30xf32> to vector<8x30xf32>
    %15 = vector.broadcast %1 : vector<8x1xf32> to vector<8x30xf32>
    %16 = arith.cmpf olt, %14, %15 : vector<8x30xf32>
    %17 = vector.broadcast %1 : vector<8x1xf32> to vector<8x30xf32>
    %18 = vector.broadcast %9 : vector<1x30xf32> to vector<8x30xf32>
    %19 = arith.cmpf ole, %17, %18 : vector<8x30xf32>
    %20 = arith.andi %16, %19 : vector<8x30xi1>
    %21 = arith.extui %20 : vector<8x30xi1> to vector<8x30xi32>
    %22 = arith.sitofp %21 : vector<8x30xi32> to vector<8x30xf32>
    %c0_5 = arith.constant 0 : index
    %c0_6 = arith.constant 0 : index
    %23 = vector.load %arg4[%c0_5, %c0_6] : memref<32x30xf32, #tpu.memory_space<vmem>>, vector<32x30xf32>
    %cst = arith.constant dense<0.000000e+00> : vector<8x30xf32>
    %24 = tpu.matmul %0, %23, %cst {dimension_numbers = #tpu.dot_dimension_numbers<[1], [0], [0], [1], [0, 0, 1, 1], [], []>} : vector<8x32xf32>, vector<32x30xf32>, vector<8x30xf32> -> vector<8x30xf32>
    %25 = vector.broadcast %3 : vector<1x30xf32> to vector<8x30xf32>
    %26 = arith.addf %24, %25 : vector<8x30xf32>
    %27 = math.tanh %26 : vector<8x30xf32>
    %28 = vector.broadcast %4 : vector<1x30xf32> to vector<8x30xf32>
    %29 = arith.mulf %27, %28 : vector<8x30xf32>
    %30 = vector.broadcast %5 : vector<1x30xf32> to vector<8x30xf32>
    %31 = arith.subf %29, %30 : vector<8x30xf32>
    %32 = math.roundeven %31 : vector<8x30xf32>
    %33 = vector.broadcast %6 : vector<1x30xf32> to vector<8x30xf32>
    %34 = arith.mulf %32, %33 : vector<8x30xf32>
    %35 = vector.broadcast %7 : vector<1x30xf32> to vector<8x30xf32>
    %36 = arith.addf %32, %35 : vector<8x30xf32>
    %37 = arith.mulf %36, %22 : vector<8x30xf32>
    %c0_7 = arith.constant 0 : index
    %c0_8 = arith.constant 0 : index
    %38 = vector.load %arg5[%c0_7, %c0_8] : memref<30x2xf32, #tpu.memory_space<vmem>>, vector<30x1xf32>
    %cst_9 = arith.constant dense<0.000000e+00> : vector<8x1xf32>
    %39 = tpu.matmul %37, %38, %cst_9 {dimension_numbers = #tpu.dot_dimension_numbers<[1], [0], [0], [1], [0, 0, 1, 1], [], []>} : vector<8x30xf32>, vector<30x1xf32>, vector<8x1xf32> -> vector<8x1xf32>
    %40 = math.roundeven %39 : vector<8x1xf32>
    %41 = arith.fptosi %40 : vector<8x1xf32> to vector<8x1xi32>
    %c0_10 = arith.constant 0 : index
    %c0_11 = arith.constant 0 : index
    %42 = vector.load %arg11[%c0_10, %c0_11] : memref<8x1xi32, #tpu.memory_space<vmem>>, vector<8x1xi32>
    tpu.vector_store %arg11[%c0_10, %c0_11], %41 {strides = array<i32>} : memref<8x1xi32, #tpu.memory_space<vmem>>, vector<8x1xi32>,
    %c0_12 = arith.constant 0 : index
    %c0_13 = arith.constant 0 : index
    %43 = vector.load %arg6[%c0_12, %c0_13] : memref<30x96xf32, #tpu.memory_space<vmem>>, vector<30x96xf32>
    %cst_14 = arith.constant dense<0.000000e+00> : vector<8x96xf32>
    %44 = tpu.matmul %34, %43, %cst_14 {dimension_numbers = #tpu.dot_dimension_numbers<[1], [0], [0], [1], [0, 0, 1, 1], [], []>} : vector<8x30xf32>, vector<30x96xf32>, vector<8x96xf32> -> vector<8x96xf32>
    %45 = vector.broadcast %10 : vector<1x96xf32> to vector<8x96xf32>
    %46 = arith.addf %44, %45 : vector<8x96xf32>
    %cst_15 = arith.constant 0.000000e+00 : f32
    %47 = vector.broadcast %cst_15 : f32 to vector<8x96xf32>
    %48 = arith.maximumf %46, %47 : vector<8x96xf32>
    %c0_16 = arith.constant 0 : index
    %c0_17 = arith.constant 0 : index
    %49 = vector.load %arg7[%c0_16, %c0_17] : memref<96x96xf32, #tpu.memory_space<vmem>>, vector<96x96xf32>
    %cst_18 = arith.constant dense<0.000000e+00> : vector<8x96xf32>
    %50 = tpu.matmul %48, %49, %cst_18 {dimension_numbers = #tpu.dot_dimension_numbers<[1], [0], [0], [1], [0, 0, 1, 1], [], []>} : vector<8x96xf32>, vector<96x96xf32>, vector<8x96xf32> -> vector<8x96xf32>
    %51 = vector.broadcast %11 : vector<1x96xf32> to vector<8x96xf32>
    %52 = arith.addf %50, %51 : vector<8x96xf32>
    %cst_19 = arith.constant 0.000000e+00 : f32
    %53 = vector.broadcast %cst_19 : f32 to vector<8x96xf32>
    %54 = arith.maximumf %52, %53 : vector<8x96xf32>
    %c0_20 = arith.constant 0 : index
    %c0_21 = arith.constant 0 : index
    %55 = vector.load %arg8[%c0_20, %c0_21] : memref<96x30xf32, #tpu.memory_space<vmem>>, vector<96x30xf32>
    %cst_22 = arith.constant dense<0.000000e+00> : vector<8x30xf32>
    %56 = tpu.matmul %54, %55, %cst_22 {dimension_numbers = #tpu.dot_dimension_numbers<[1], [0], [0], [1], [0, 0, 1, 1], [], []>} : vector<8x96xf32>, vector<96x30xf32>, vector<8x30xf32> -> vector<8x30xf32>
    %57 = vector.broadcast %12 : vector<1x30xf32> to vector<8x30xf32>
    %58 = arith.addf %56, %57 : vector<8x30xf32>
    %59 = arith.mulf %58, %22 : vector<8x30xf32>
    %60 = arith.mulf %59, %58 : vector<8x30xf32>
    %c0_23 = arith.constant 0 : index
    %c1 = arith.constant 1 : index
    %61 = vector.load %arg5[%c0_23, %c1] : memref<30x2xf32, #tpu.memory_space<vmem>>, vector<30x1xf32>
    %cst_24 = arith.constant dense<0.000000e+00> : vector<8x1xf32>
    %62 = tpu.matmul %60, %61, %cst_24 {dimension_numbers = #tpu.dot_dimension_numbers<[1], [0], [0], [1], [0, 0, 1, 1], [], []>} : vector<8x30xf32>, vector<30x1xf32>, vector<8x1xf32> -> vector<8x1xf32>
    %63 = math.sqrt %62 : vector<8x1xf32>
    %cst_25 = arith.constant 9.99999997E-7 : f32
    %64 = vector.broadcast %cst_25 : f32 to vector<8x1xf32>
    %65 = arith.addf %63, %64 : vector<8x1xf32>
    %cst_26 = arith.constant 1.000000e+00 : f32
    %66 = vector.broadcast %cst_26 : f32 to vector<8x1xf32>
    %67 = arith.divf %66, %65 : vector<8x1xf32>
    %68 = vector.broadcast %67 : vector<8x1xf32> to vector<8x30xf32>
    %69 = arith.mulf %59, %68 : vector<8x30xf32>
    %c0_27 = arith.constant 0 : index
    %c0_28 = arith.constant 0 : index
    %70 = vector.load %arg9[%c0_27, %c0_28] : memref<30x32xf32, #tpu.memory_space<vmem>>, vector<30x32xf32>
    %cst_29 = arith.constant dense<0.000000e+00> : vector<8x32xf32>
    %71 = tpu.matmul %69, %70, %cst_29 {dimension_numbers = #tpu.dot_dimension_numbers<[1], [0], [0], [1], [0, 0, 1, 1], [], []>} : vector<8x30xf32>, vector<30x32xf32>, vector<8x32xf32> -> vector<8x32xf32>
    %72 = vector.broadcast %13 : vector<1x32xf32> to vector<8x32xf32>
    %73 = arith.addf %71, %72 : vector<8x32xf32>
    %c0_30 = arith.constant 0 : index
    %c0_31 = arith.constant 0 : index
    %74 = vector.load %arg10[%c0_30, %c0_31] : memref<8x32xf32, #tpu.memory_space<vmem>>, vector<8x32xf32>
    tpu.vector_store %arg10[%c0_30, %c0_31], %73 {strides = array<i32>} : memref<8x32xf32, #tpu.memory_space<vmem>>, vector<8x32xf32>,
    return
  }
  func.func @transform_0(%arg0: i32) -> (i32, i32) {
    %c0_i32 = arith.constant 0 : i32
    %c0_i32_0 = arith.constant 0 : i32
    return %arg0, %c0_i32 : i32, i32
  }
  func.func @transform_1(%arg0: i32) -> (i32, i32) {
    %c0_i32 = arith.constant 0 : i32
    %c0_i32_0 = arith.constant 0 : i32
    return %arg0, %c0_i32 : i32, i32
  }
  func.func @transform_2(%arg0: i32) -> (i32, i32) {
    %c0_i32 = arith.constant 0 : i32
    %c0_i32_0 = arith.constant 0 : i32
    %c0_i32_1 = arith.constant 0 : i32
    return %c0_i32, %c0_i32_0 : i32, i32
  }
  func.func @transform_3(%arg0: i32) -> (i32, i32) {
    %c0_i32 = arith.constant 0 : i32
    %c0_i32_0 = arith.constant 0 : i32
    %c0_i32_1 = arith.constant 0 : i32
    return %c0_i32, %c0_i32_0 : i32, i32
  }
  func.func @transform_4(%arg0: i32) -> (i32, i32) {
    %c0_i32 = arith.constant 0 : i32
    %c0_i32_0 = arith.constant 0 : i32
    %c0_i32_1 = arith.constant 0 : i32
    return %c0_i32, %c0_i32_0 : i32, i32
  }
  func.func @transform_5(%arg0: i32) -> (i32, i32) {
    %c0_i32 = arith.constant 0 : i32
    %c0_i32_0 = arith.constant 0 : i32
    %c0_i32_1 = arith.constant 0 : i32
    return %c0_i32, %c0_i32_0 : i32, i32
  }
  func.func @transform_6(%arg0: i32) -> (i32, i32) {
    %c0_i32 = arith.constant 0 : i32
    %c0_i32_0 = arith.constant 0 : i32
    %c0_i32_1 = arith.constant 0 : i32
    return %c0_i32, %c0_i32_0 : i32, i32
  }
  func.func @transform_7(%arg0: i32) -> (i32, i32) {
    %c0_i32 = arith.constant 0 : i32
    %c0_i32_0 = arith.constant 0 : i32
    %c0_i32_1 = arith.constant 0 : i32
    return %c0_i32, %c0_i32_0 : i32, i32
  }
  func.func @transform_8(%arg0: i32) -> (i32, i32) {
    %c0_i32 = arith.constant 0 : i32
    %c0_i32_0 = arith.constant 0 : i32
    %c0_i32_1 = arith.constant 0 : i32
    return %c0_i32, %c0_i32_0 : i32, i32
  }
  func.func @transform_9(%arg0: i32) -> (i32, i32) {
    %c0_i32 = arith.constant 0 : i32
    %c0_i32_0 = arith.constant 0 : i32
    return %arg0, %c0_i32 : i32, i32
  }
  func.func @transform_10(%arg0: i32) -> (i32, i32) {
    %c0_i32 = arith.constant 0 : i32
    %c0_i32_0 = arith.constant 0 : i32
    return %arg0, %c0_i32 : i32, i32
  }
}

</mosaic_0001>

<llo_original>
// kernel: tpu_custom_call.1
$region0: #{tpu_custom_call.1}
  #allocation0 [shape = 'u32[]', space=smem, size = 0x4, offset = 0x4, fixed_abs, tag = 'smem constant byte address 0x4 - core index']
  #allocation1 [shape = 'u32[144,128]{1,0:T(1,128)}', space=vmem, size = 0x12000, scoped, tag = 'internal scratch']
  %s0 = inlined_call_operand.hbm [shape: f32[8,32], index: 0, kind: input, shape index: {}]
  %s1 = inlined_call_operand.vmem [shape: f32[8,1], index: 1, kind: input, shape index: {}]
  %s2 = inlined_call_operand.vmem [shape: f32[11,96], index: 2, kind: input, shape index: {}]
  %s3 = inlined_call_operand.vmem [shape: f32[32,30], index: 3, kind: input, shape index: {}]
  %s4 = inlined_call_operand.vmem [shape: f32[30,2], index: 4, kind: input, shape index: {}]
  %s5 = inlined_call_operand.hbm [shape: f32[30,96], index: 5, kind: input, shape index: {}]
  %s6 = inlined_call_operand.vmem [shape: f32[96,96], index: 6, kind: input, shape index: {}]
  %s7 = inlined_call_operand.vmem [shape: f32[96,30], index: 7, kind: input, shape index: {}]
  %s8 = inlined_call_operand.hbm [shape: f32[30,32], index: 8, kind: input, shape index: {}]
  %s9 = inlined_call_operand.hbm [shape: f32[8,32], index: 9, kind: output, shape index: {0}]
  %s10 = inlined_call_operand.vmem [shape: s32[8,1], index: 10, kind: output, shape index: {1}]
  %11 = xla_tuple %s9, %s10
  %s12 = sld [smem:[#allocation0]]
  $region66: #{tpu_custom_call.1} parent=0
    _
  %s14 = ssub.s32 1, %s12
  %s15 = scalar_select 0, %s14, %s12
  $region1: #{tpu_custom_call.1} parent=0
    #allocation2 [shape = 'u8[4096]{0}', space=vmem, size = 0x1000, scoped, tag = 'input window, operand 0, single buffered']
    #allocation3 [shape = 's32[1]{0}', space=sflag, size = 0x4, scoped, tag = 'scoped memory for tpu_custom_call.1']
    #allocation4 [shape = 's32[1]{0}', space=sflag, size = 0x4, scoped, tag = 'scoped memory for tpu_custom_call.1']
    #allocation5 [shape = 'u8[16384]{0}', space=vmem, size = 0x4000, scoped, tag = 'input window, operand 5, single buffered']
    #allocation6 [shape = 's32[1]{0}', space=sflag, size = 0x4, scoped, tag = 'scoped memory for tpu_custom_call.1']
    #allocation7 [shape = 'u8[16384]{0}', space=vmem, size = 0x4000, scoped, tag = 'input window, operand 8, single buffered']
    #allocation8 [shape = 'u8[4096]{0}', space=vmem, size = 0x1000, scoped, tag = 'output window, operand 0, single buffered']
    %16 = vsyncpa [#allocation3], 0
    %17 = vsyncpa [#allocation6], 0
    %18 = vsyncpa [#allocation4], 0
    // Predicated region
    $region2: #{tpu_custom_call.1} parent=1 // pred_check
      _
    $region3: #{tpu_custom_call.1} parent=1 // pred_check_branch
      %20 = sbr.rel (0) target = $region5
    $region4: #{tpu_custom_call.1} parent=1 // pred_region
      %s22 = ssub.s32 128, 128
      %23 = vsyncadd [#allocation3], %s22
      %s25 = sshll.u32 [#allocation2], 4
      %s26 = int_to_ptr.vmem [resolvable:$true] %s25
      %28 = dma.hbm_to_vmem [thread:$0]  %s0, 128, %s26, [#allocation3]
    $region5: #{tpu_custom_call.1} parent=1 // pred_fallthru
      _
    // Predicated region
    $region6: #{tpu_custom_call.1} parent=1 // pred_check
      _
    $region7: #{tpu_custom_call.1} parent=1 // pred_check_branch
      %30 = sbr.rel (0) target = $region9
    $region8: #{tpu_custom_call.1} parent=1 // pred_region
      _
    $region9: #{tpu_custom_call.1} parent=1 // pred_fallthru
      _
    // Predicated region
    $region10: #{tpu_custom_call.1} parent=1 // pred_check
      _
    $region11: #{tpu_custom_call.1} parent=1 // pred_check_branch
      %32 = sbr.rel (0) target = $region13
    $region12: #{tpu_custom_call.1} parent=1 // pred_region
      _
    $region13: #{tpu_custom_call.1} parent=1 // pred_fallthru
      _
    // Predicated region
    $region14: #{tpu_custom_call.1} parent=1 // pred_check
      _
    $region15: #{tpu_custom_call.1} parent=1 // pred_check_branch
      %34 = sbr.rel (0) target = $region17
    $region16: #{tpu_custom_call.1} parent=1 // pred_region
      _
    $region17: #{tpu_custom_call.1} parent=1 // pred_fallthru
      _
    // Predicated region
    $region18: #{tpu_custom_call.1} parent=1 // pred_check
      _
    $region19: #{tpu_custom_call.1} parent=1 // pred_check_branch
      %36 = sbr.rel (0) target = $region21
    $region20: #{tpu_custom_call.1} parent=1 // pred_region
      _
    $region21: #{tpu_custom_call.1} parent=1 // pred_fallthru
      _
    // Predicated region
    $region22: #{tpu_custom_call.1} parent=1 // pred_check
      _
    $region23: #{tpu_custom_call.1} parent=1 // pred_check_branch
      %38 = sbr.rel (0) target = $region25
    $region24: #{tpu_custom_call.1} parent=1 // pred_region
      %s40 = ssub.s32 512, 512
      %41 = vsyncadd [#allocation6], %s40
      %s42 = sshll.u32 [#allocation5], 4
      %s43 = int_to_ptr.vmem [resolvable:$true] %s42
      %48 = dma.hbm_to_vmem [thread:$0]  %s5, 512, %s43, [#allocation6], 128, 128, 8
    $region25: #{tpu_custom_call.1} parent=1 // pred_fallthru
      _
    // Predicated region
    $region26: #{tpu_custom_call.1} parent=1 // pred_check
      _
    $region27: #{tpu_custom_call.1} parent=1 // pred_check_branch
      %50 = sbr.rel (0) target = $region29
    $region28: #{tpu_custom_call.1} parent=1 // pred_region
      _
    $region29: #{tpu_custom_call.1} parent=1 // pred_fallthru
      _
    // Predicated region
    $region30: #{tpu_custom_call.1} parent=1 // pred_check
      _
    $region31: #{tpu_custom_call.1} parent=1 // pred_check_branch
      %52 = sbr.rel (0) target = $region33
    $region32: #{tpu_custom_call.1} parent=1 // pred_region
      _
    $region33: #{tpu_custom_call.1} parent=1 // pred_fallthru
      _
    // Predicated region
    $region34: #{tpu_custom_call.1} parent=1 // pred_check
      _
    $region35: #{tpu_custom_call.1} parent=1 // pred_check_branch
      %54 = sbr.rel (0) target = $region37
    $region36: #{tpu_custom_call.1} parent=1 // pred_region
      %s56 = ssub.s32 512, 512
      %57 = vsyncadd [#allocation6], %s56
      %s58 = sshll.u32 [#allocation7], 4
      %s59 = int_to_ptr.vmem [resolvable:$true] %s58
      %64 = dma.hbm_to_vmem [thread:$0]  %s8, 512, %s59, [#allocation6], 128, 128, 8
    $region37: #{tpu_custom_call.1} parent=1 // pred_fallthru
      _
    // Predicated region
    $region38: #{tpu_custom_call.1} parent=1 // pred_check
      _
    $region39: #{tpu_custom_call.1} parent=1 // pred_check_branch
      %66 = sbr.rel (0) target = $region41
    $region40: #{tpu_custom_call.1} parent=1 // pred_region
      %67 = dma.done [#allocation3], 128
    $region41: #{tpu_custom_call.1} parent=1 // pred_fallthru
      _
    // Predicated region
    $region42: #{tpu_custom_call.1} parent=1 // pred_check
      _
    $region43: #{tpu_custom_call.1} parent=1 // pred_check_branch
      %69 = sbr.rel (0) target = $region45
    $region44: #{tpu_custom_call.1} parent=1 // pred_region
      %70 = dma.done [#allocation6], 512
    $region45: #{tpu_custom_call.1} parent=1 // pred_fallthru
      _
    // Predicated region
    $region46: #{tpu_custom_call.1} parent=1 // pred_check
      _
    $region47: #{tpu_custom_call.1} parent=1 // pred_check_branch
      %72 = sbr.rel (0) target = $region49
    $region48: #{tpu_custom_call.1} parent=1 // pred_region
      %73 = dma.done [#allocation6], 512
    $region49: #{tpu_custom_call.1} parent=1 // pred_fallthru
      _
    %v74 = vld [vmem:[#allocation2] sm:$0xff]
    %v75 = vld [vmem:[%s1] sm:$0xff]
    %v76 = vld [vmem:[%s2] sm:$0xff]
    %v77 = vld [vmem:[%s2 + $0x8] sm:$0x7]
    %v78 = vlaneseq
    %v79 = vshrl.u32 %v78, 7
    %v80 = vsub.s32 5, %v79
    %v81 = vrot.slane %v76, %v80
    %83 = vset.pattern.permute.xlu0 0
    %84 = vperm.xlu0 %83, %v75
    %v85 = vpop.permute.xlu0 %84
    %vm87 = vcmp.lt.f32.partialorder %v81, %v85
    %v88 = vlaneseq
    %v89 = vshrl.u32 %v88, 7
    %v90 = vsub.s32 6, %v89
    %v91 = vrot.slane %v76, %v90
    %vm92 = vcmp.le.f32.partialorder %v85, %v91
    %vm93 = vmand %vm87, %vm92
    %v94 = vsel %vm93, 1, 0
    %v95 = vcvt.s32.f32 %v94
    %v96 = vld [vmem:[%s3] sm:$0xff]
    %v97 = vld [vmem:[%s3 + $0x8] sm:$0xff]
    %v98 = vld [vmem:[%s3 + $0x10] sm:$0xff]
    %v99 = vld [vmem:[%s3 + $0x18] sm:$0xff]
    %v100 = vlaneseq
    %v101 = vshrl.u32 %v100, 7
    %v102 = vsub.s32 0, %v101
    %v103 = vrot.slane %v76, %v102
    %vm104 = vcmask 261120
    %v106 = vsel %vm104, %v74, 0
    %108 = vmatprep.subr.mxu0 0.0
    %109 = vmatpush1.msra.mxu0 0.0
    %110 = vmatprep.subr.mxu0 0.0
    %111 = vmatpush1.msra.mxu0 0.0
    %112 = vmatprep.subr.mxu0 0.0
    %113 = vmatpush1.msra.mxu0 0.0
    %114 = vmatprep.subr.mxu0 0.0
    %115 = vmatpush1.msra.mxu0 0.0
    %116 = vmatprep.subr.mxu0 0.0
    %117 = vmatpush1.msra.mxu0 0.0
    %118 = vmatprep.subr.mxu0 0.0
    %119 = vmatpush1.msra.mxu0 0.0
    %120 = vmatprep.subr.mxu0 0.0
    %121 = vmatpush1.msra.mxu0 0.0
    %122 = vmatprep.subr.mxu0 0.0
    %123 = vmatpush1.msra.mxu0 0.0
    %124 = vmatprep.subr.mxu0 0.0
    %125 = vmatpush1.msra.mxu0 0.0
    %126 = vmatprep.subr.mxu0 0.0
    %127 = vmatpush1.msra.mxu0 0.0
    %128 = vmatprep.subr.mxu0 0.0
    %129 = vmatpush1.msra.mxu0 0.0
    %130 = vmatprep.subr.mxu0 0.0
    %131 = vmatpush1.msra.mxu0 0.0
    %132 = vmatprep.subr.mxu0 0.0
    %133 = vmatpush1.msra.mxu0 %v99
    %134 = vmatprep.subr.mxu0 0.0
    %135 = vmatpush1.msra.mxu0 %v98
    %136 = vmatprep.subr.mxu0 0.0
    %137 = vmatpush1.msra.mxu0 %v97
    %138 = vmatprep.subr.mxu0 0.0
    %139 = vmatpush1.msra.mxu0 %v96
    %140 = vmatprep.subr.mxu0 0.0
    %141 = vmatpush2.msra.mxu0 0.0
    %142 = vmatprep.subr.mxu0 0.0
    %143 = vmatpush2.msra.mxu0 0.0
    %144 = vmatprep.subr.mxu0 0.0
    %145 = vmatpush2.msra.mxu0 0.0
    %146 = vmatprep.subr.mxu0 0.0
    %147 = vmatpush2.msra.mxu0 0.0
    %148 = vmatprep.subr.mxu0 0.0
    %149 = vmatpush2.msra.mxu0 0.0
    %150 = vmatprep.subr.mxu0 0.0
    %151 = vmatpush2.msra.mxu0 0.0
    %152 = vmatprep.subr.mxu0 0.0
    %153 = vmatpush2.msra.mxu0 0.0
    %154 = vmatprep.subr.mxu0 0.0
    %155 = vmatpush2.msra.mxu0 0.0
    %156 = vmatprep.subr.mxu0 0.0
    %157 = vmatpush2.msra.mxu0 0.0
    %158 = vmatprep.subr.mxu0 0.0
    %159 = vmatpush2.msra.mxu0 0.0
    %160 = vmatprep.subr.mxu0 0.0
    %161 = vmatpush2.msra.mxu0 0.0
    %162 = vmatprep.subr.mxu0 0.0
    %163 = vmatpush2.msra.mxu0 0.0
    %164 = vmatprep.subr.mxu0 0.0
    %165 = vmatpush2.msra.mxu0 0.0
    %166 = vmatprep.subr.mxu0 0.0
    %167 = vmatpush2.msra.mxu0 0.0
    %168 = vmatprep.subr.mxu0 0.0
    %169 = vmatpush2.msra.mxu0 0.0
    %170 = vmatprep.subr.mxu0 0.0
    %171 = vmatpush2.msra.mxu0 0.0
    %172 = vmatprep.mubr.f32.mxu0 0.0
    %173 = vmatmul.mubr.f32.gmra.mxu0 %v106
    %v174 = vpop.f32.mrf.mxu0
    %v175 = vadd.f32 %v103, %v174
    %v176 = vpop.f32.mrf.mxu0
    %177 = vdwg.mxu0
    %v178 = vtanh.pop %v175
    %v179 = vlaneseq
    %v180 = vshrl.u32 %v179, 7
    %v181 = vsub.s32 1, %v180
    %v182 = vrot.slane %v76, %v181
    %v183 = vmul.f32 %v178, %v182
    %v184 = vlaneseq
    %v185 = vshrl.u32 %v184, 7
    %v186 = vsub.s32 2, %v185
    %v187 = vrot.slane %v76, %v186
    %v188 = vsub.f32 %v183, %v187
    %v189 = vround.ne.pseudo %v188
    %v190 = vlaneseq
    %v191 = vshrl.u32 %v190, 7
    %v192 = vsub.s32 3, %v191
    %v193 = vrot.slane %v76, %v192
    %v194 = vmul.f32 %v189, %v193
    %v195 = vlaneseq
    %v196 = vshrl.u32 %v195, 7
    %v197 = vsub.s32 4, %v196
    %v198 = vrot.slane %v76, %v197
    %v199 = vadd.f32 %v189, %v198
    %v200 = vmul.f32 %v199, %v95
    %v201 = vld [vmem:[%s4] sm:$0xff]
    %v202 = vld [vmem:[%s4 + $0x8] sm:$0xff]
    %v203 = vld [vmem:[%s4 + $0x10] sm:$0xff]
    %v204 = vld [vmem:[%s4 + $0x18] sm:$0x3f]
    %vm205 = vcmask 244736
    %v207 = vsel %vm205, %v200, 0
    %vm209 = vcmask 1045504
    %v211 = vsel %vm209, %v204, 0
    %213 = vmatprep.subr.mxu0 0.0
    %214 = vmatpush1.msra.mxu0 0.0
    %215 = vmatprep.subr.mxu0 0.0
    %216 = vmatpush1.msra.mxu0 0.0
    %217 = vmatprep.subr.mxu0 0.0
    %218 = vmatpush1.msra.mxu0 0.0
    %219 = vmatprep.subr.mxu0 0.0
    %220 = vmatpush1.msra.mxu0 0.0
    %221 = vmatprep.subr.mxu0 0.0
    %222 = vmatpush1.msra.mxu0 0.0
    %223 = vmatprep.subr.mxu0 0.0
    %224 = vmatpush1.msra.mxu0 0.0
    %225 = vmatprep.subr.mxu0 0.0
    %226 = vmatpush1.msra.mxu0 0.0
    %227 = vmatprep.subr.mxu0 0.0
    %228 = vmatpush1.msra.mxu0 0.0
    %229 = vmatprep.subr.mxu0 0.0
    %230 = vmatpush1.msra.mxu0 0.0
    %231 = vmatprep.subr.mxu0 0.0
    %232 = vmatpush1.msra.mxu0 0.0
    %233 = vmatprep.subr.mxu0 0.0
    %234 = vmatpush1.msra.mxu0 0.0
    %235 = vmatprep.subr.mxu0 0.0
    %236 = vmatpush1.msra.mxu0 0.0
    %237 = vmatprep.subr.mxu0 0.0
    %238 = vmatpush1.msra.mxu0 %v211
    %239 = vmatprep.subr.mxu0 0.0
    %240 = vmatpush1.msra.mxu0 %v203
    %241 = vmatprep.subr.mxu0 0.0
    %242 = vmatpush1.msra.mxu0 %v202
    %243 = vmatprep.subr.mxu0 0.0
    %244 = vmatpush1.msra.mxu0 %v201
    %245 = vmatprep.subr.mxu0 0.0
    %246 = vmatpush2.msra.mxu0 0.0
    %247 = vmatprep.subr.mxu0 0.0
    %248 = vmatpush2.msra.mxu0 0.0
    %249 = vmatprep.subr.mxu0 0.0
    %250 = vmatpush2.msra.mxu0 0.0
    %251 = vmatprep.subr.mxu0 0.0
    %252 = vmatpush2.msra.mxu0 0.0
    %253 = vmatprep.subr.mxu0 0.0
    %254 = vmatpush2.msra.mxu0 0.0
    %255 = vmatprep.subr.mxu0 0.0
    %256 = vmatpush2.msra.mxu0 0.0
    %257 = vmatprep.subr.mxu0 0.0
    %258 = vmatpush2.msra.mxu0 0.0
    %259 = vmatprep.subr.mxu0 0.0
    %260 = vmatpush2.msra.mxu0 0.0
    %261 = vmatprep.subr.mxu0 0.0
    %262 = vmatpush2.msra.mxu0 0.0
    %263 = vmatprep.subr.mxu0 0.0
    %264 = vmatpush2.msra.mxu0 0.0
    %265 = vmatprep.subr.mxu0 0.0
    %266 = vmatpush2.msra.mxu0 0.0
    %267 = vmatprep.subr.mxu0 0.0
    %268 = vmatpush2.msra.mxu0 0.0
    %269 = vmatprep.subr.mxu0 0.0
    %270 = vmatpush2.msra.mxu0 0.0
    %271 = vmatprep.subr.mxu0 0.0
    %272 = vmatpush2.msra.mxu0 0.0
    %273 = vmatprep.subr.mxu0 0.0
    %274 = vmatpush2.msra.mxu0 0.0
    %275 = vmatprep.subr.mxu0 0.0
    %276 = vmatpush2.msra.mxu0 0.0
    %277 = vmatprep.mubr.f32.mxu0 0.0
    %278 = vmatmul.mubr.f32.gmra.mxu0 %v207
    %v279 = vpop.f32.mrf.mxu0
    %v280 = vadd.f32 0.0, %v279
    %v281 = vpop.f32.mrf.mxu0
    %282 = vdwg.mxu0
    %v283 = vcvt.f32.s32.ties.to.even %v280
    %vm284 = vcmask 7168
    %285 = vst.msk [vmem:[%s10] sm:$0xff] %vm284, %v283
    %v286 = vld [vmem:[#allocation5] sm:$0xff]
    %v287 = vld [vmem:[#allocation5 + $0x8] sm:$0xff]
    %v288 = vld [vmem:[#allocation5 + $0x10] sm:$0xff]
    %v289 = vld [vmem:[#allocation5 + $0x18] sm:$0x3f]
    %v290 = vlaneseq
    %v291 = vshrl.u32 %v290, 7
    %v292 = vsub.s32 7, %v291
    %v293 = vrot.slane %v76, %v292
    %v295 = vsel %vm205, %v194, 0
    %v298 = vsel %vm209, %v289, 0
    %300 = vmatprep.subr.mxu0 0.0
    %301 = vmatpush1.msra.mxu0 0.0
    %302 = vmatprep.subr.mxu0 0.0
    %303 = vmatpush1.msra.mxu0 0.0
    %304 = vmatprep.subr.mxu0 0.0
    %305 = vmatpush1.msra.mxu0 0.0
    %306 = vmatprep.subr.mxu0 0.0
    %307 = vmatpush1.msra.mxu0 0.0
    %308 = vmatprep.subr.mxu0 0.0
    %309 = vmatpush1.msra.mxu0 0.0
    %310 = vmatprep.subr.mxu0 0.0
    %311 = vmatpush1.msra.mxu0 0.0
    %312 = vmatprep.subr.mxu0 0.0
    %313 = vmatpush1.msra.mxu0 0.0
    %314 = vmatprep.subr.mxu0 0.0
    %315 = vmatpush1.msra.mxu0 0.0
    %316 = vmatprep.subr.mxu0 0.0
    %317 = vmatpush1.msra.mxu0 0.0
    %318 = vmatprep.subr.mxu0 0.0
    %319 = vmatpush1.msra.mxu0 0.0
    %320 = vmatprep.subr.mxu0 0.0
    %321 = vmatpush1.msra.mxu0 0.0
    %322 = vmatprep.subr.mxu0 0.0
    %323 = vmatpush1.msra.mxu0 0.0
    %324 = vmatprep.subr.mxu0 0.0
    %325 = vmatpush1.msra.mxu0 %v298
    %326 = vmatprep.subr.mxu0 0.0
    %327 = vmatpush1.msra.mxu0 %v288
    %328 = vmatprep.subr.mxu0 0.0
    %329 = vmatpush1.msra.mxu0 %v287
    %330 = vmatprep.subr.mxu0 0.0
    %331 = vmatpush1.msra.mxu0 %v286
    %332 = vmatprep.subr.mxu0 0.0
    %333 = vmatpush2.msra.mxu0 0.0
    %334 = vmatprep.subr.mxu0 0.0
    %335 = vmatpush2.msra.mxu0 0.0
    %336 = vmatprep.subr.mxu0 0.0
    %337 = vmatpush2.msra.mxu0 0.0
    %338 = vmatprep.subr.mxu0 0.0
    %339 = vmatpush2.msra.mxu0 0.0
    %340 = vmatprep.subr.mxu0 0.0
    %341 = vmatpush2.msra.mxu0 0.0
    %342 = vmatprep.subr.mxu0 0.0
    %343 = vmatpush2.msra.mxu0 0.0
    %344 = vmatprep.subr.mxu0 0.0
    %345 = vmatpush2.msra.mxu0 0.0
    %346 = vmatprep.subr.mxu0 0.0
    %347 = vmatpush2.msra.mxu0 0.0
    %348 = vmatprep.subr.mxu0 0.0
    %349 = vmatpush2.msra.mxu0 0.0
    %350 = vmatprep.subr.mxu0 0.0
    %351 = vmatpush2.msra.mxu0 0.0
    %352 = vmatprep.subr.mxu0 0.0
    %353 = vmatpush2.msra.mxu0 0.0
    %354 = vmatprep.subr.mxu0 0.0
    %355 = vmatpush2.msra.mxu0 0.0
    %356 = vmatprep.subr.mxu0 0.0
    %357 = vmatpush2.msra.mxu0 0.0
    %358 = vmatprep.subr.mxu0 0.0
    %359 = vmatpush2.msra.mxu0 0.0
    %360 = vmatprep.subr.mxu0 0.0
    %361 = vmatpush2.msra.mxu0 0.0
    %362 = vmatprep.subr.mxu0 0.0
    %363 = vmatpush2.msra.mxu0 0.0
    %364 = vmatprep.mubr.f32.mxu0 0.0
    %365 = vmatmul.mubr.f32.gmra.mxu0 %v295
    %v366 = vpop.f32.mrf.mxu0
    %v367 = vadd.f32 %v293, %v366
    %v368 = vpop.f32.mrf.mxu0
    %369 = vdwg.mxu0
    %v370 = vmax.f32 %v367, 0.0
    %v371 = vld [vmem:[%s6] sm:$0xff]
    %v372 = vld [vmem:[%s6 + $0x8] sm:$0xff]
    %v373 = vld [vmem:[%s6 + $0x10] sm:$0xff]
    %v374 = vld [vmem:[%s6 + $0x18] sm:$0xff]
    %v375 = vld [vmem:[%s6 + $0x20] sm:$0xff]
    %v376 = vld [vmem:[%s6 + $0x28] sm:$0xff]
    %v377 = vld [vmem:[%s6 + $0x30] sm:$0xff]
    %v378 = vld [vmem:[%s6 + $0x38] sm:$0xff]
    %v379 = vld [vmem:[%s6 + $0x40] sm:$0xff]
    %v380 = vld [vmem:[%s6 + $0x48] sm:$0xff]
    %v381 = vld [vmem:[%s6 + $0x50] sm:$0xff]
    %v382 = vld [vmem:[%s6 + $0x58] sm:$0xff]
    %v383 = vlaneseq
    %v384 = vshrl.u32 %v383, 7
    %v385 = vsub.s32 0, %v384
    %v386 = vrot.slane %v77, %v385
    %vm387 = vcmask 785408
    %v389 = vsel %vm387, %v370, 0
    %391 = vmatprep.subr.mxu0 0.0
    %392 = vmatpush1.msra.mxu0 0.0
    %393 = vmatprep.subr.mxu0 0.0
    %394 = vmatpush1.msra.mxu0 0.0
    %395 = vmatprep.subr.mxu0 0.0
    %396 = vmatpush1.msra.mxu0 0.0
    %397 = vmatprep.subr.mxu0 0.0
    %398 = vmatpush1.msra.mxu0 0.0
    %399 = vmatprep.subr.mxu0 0.0
    %400 = vmatpush1.msra.mxu0 %v382
    %401 = vmatprep.subr.mxu0 0.0
    %402 = vmatpush1.msra.mxu0 %v381
    %403 = vmatprep.subr.mxu0 0.0
    %404 = vmatpush1.msra.mxu0 %v380
    %405 = vmatprep.subr.mxu0 0.0
    %406 = vmatpush1.msra.mxu0 %v379
    %407 = vmatprep.subr.mxu0 0.0
    %408 = vmatpush1.msra.mxu0 %v378
    %409 = vmatprep.subr.mxu0 0.0
    %410 = vmatpush1.msra.mxu0 %v377
    %411 = vmatprep.subr.mxu0 0.0
    %412 = vmatpush1.msra.mxu0 %v376
    %413 = vmatprep.subr.mxu0 0.0
    %414 = vmatpush1.msra.mxu0 %v375
    %415 = vmatprep.subr.mxu0 0.0
    %416 = vmatpush1.msra.mxu0 %v374
    %417 = vmatprep.subr.mxu0 0.0
    %418 = vmatpush1.msra.mxu0 %v373
    %419 = vmatprep.subr.mxu0 0.0
    %420 = vmatpush1.msra.mxu0 %v372
    %421 = vmatprep.subr.mxu0 0.0
    %422 = vmatpush1.msra.mxu0 %v371
    %423 = vmatprep.subr.mxu0 0.0
    %424 = vmatpush2.msra.mxu0 0.0
    %425 = vmatprep.subr.mxu0 0.0
    %426 = vmatpush2.msra.mxu0 0.0
    %427 = vmatprep.subr.mxu0 0.0
    %428 = vmatpush2.msra.mxu0 0.0
    %429 = vmatprep.subr.mxu0 0.0
    %430 = vmatpush2.msra.mxu0 0.0
    %431 = vmatprep.subr.mxu0 0.0
    %432 = vmatpush2.msra.mxu0 0.0
    %433 = vmatprep.subr.mxu0 0.0
    %434 = vmatpush2.msra.mxu0 0.0
    %435 = vmatprep.subr.mxu0 0.0
    %436 = vmatpush2.msra.mxu0 0.0
    %437 = vmatprep.subr.mxu0 0.0
    %438 = vmatpush2.msra.mxu0 0.0
    %439 = vmatprep.subr.mxu0 0.0
    %440 = vmatpush2.msra.mxu0 0.0
    %441 = vmatprep.subr.mxu0 0.0
    %442 = vmatpush2.msra.mxu0 0.0
    %443 = vmatprep.subr.mxu0 0.0
    %444 = vmatpush2.msra.mxu0 0.0
    %445 = vmatprep.subr.mxu0 0.0
    %446 = vmatpush2.msra.mxu0 0.0
    %447 = vmatprep.subr.mxu0 0.0
    %448 = vmatpush2.msra.mxu0 0.0
    %449 = vmatprep.subr.mxu0 0.0
    %450 = vmatpush2.msra.mxu0 0.0
    %451 = vmatprep.subr.mxu0 0.0
    %452 = vmatpush2.msra.mxu0 0.0
    %453 = vmatprep.subr.mxu0 0.0
    %454 = vmatpush2.msra.mxu0 0.0
    %455 = vmatprep.mubr.f32.mxu0 0.0
    %456 = vmatmul.mubr.f32.gmra.mxu0 %v389
    %v457 = vpop.f32.mrf.mxu0
    %v458 = vadd.f32 %v386, %v457
    %v459 = vpop.f32.mrf.mxu0
    %460 = vdwg.mxu0
    %v461 = vmax.f32 %v458, 0.0
    %v462 = vld [vmem:[%s7] sm:$0xff]
    %v463 = vld [vmem:[%s7 + $0x8] sm:$0xff]
    %v464 = vld [vmem:[%s7 + $0x10] sm:$0xff]
    %v465 = vld [vmem:[%s7 + $0x18] sm:$0xff]
    %v466 = vld [vmem:[%s7 + $0x20] sm:$0xff]
    %v467 = vld [vmem:[%s7 + $0x28] sm:$0xff]
    %v468 = vld [vmem:[%s7 + $0x30] sm:$0xff]
    %v469 = vld [vmem:[%s7 + $0x38] sm:$0xff]
    %v470 = vld [vmem:[%s7 + $0x40] sm:$0xff]
    %v471 = vld [vmem:[%s7 + $0x48] sm:$0xff]
    %v472 = vld [vmem:[%s7 + $0x50] sm:$0xff]
    %v473 = vld [vmem:[%s7 + $0x58] sm:$0xff]
    %v474 = vlaneseq
    %v475 = vshrl.u32 %v474, 7
    %v476 = vsub.s32 1, %v475
    %v477 = vrot.slane %v77, %v476
    %v479 = vsel %vm387, %v461, 0
    %481 = vmatprep.subr.mxu0 0.0
    %482 = vmatpush1.msra.mxu0 0.0
    %483 = vmatprep.subr.mxu0 0.0
    %484 = vmatpush1.msra.mxu0 0.0
    %485 = vmatprep.subr.mxu0 0.0
    %486 = vmatpush1.msra.mxu0 0.0
    %487 = vmatprep.subr.mxu0 0.0
    %488 = vmatpush1.msra.mxu0 0.0
    %489 = vmatprep.subr.mxu0 0.0
    %490 = vmatpush1.msra.mxu0 %v473
    %491 = vmatprep.subr.mxu0 0.0
    %492 = vmatpush1.msra.mxu0 %v472
    %493 = vmatprep.subr.mxu0 0.0
    %494 = vmatpush1.msra.mxu0 %v471
    %495 = vmatprep.subr.mxu0 0.0
    %496 = vmatpush1.msra.mxu0 %v470
    %497 = vmatprep.subr.mxu0 0.0
    %498 = vmatpush1.msra.mxu0 %v469
    %499 = vmatprep.subr.mxu0 0.0
    %500 = vmatpush1.msra.mxu0 %v468
    %501 = vmatprep.subr.mxu0 0.0
    %502 = vmatpush1.msra.mxu0 %v467
    %503 = vmatprep.subr.mxu0 0.0
    %504 = vmatpush1.msra.mxu0 %v466
    %505 = vmatprep.subr.mxu0 0.0
    %506 = vmatpush1.msra.mxu0 %v465
    %507 = vmatprep.subr.mxu0 0.0
    %508 = vmatpush1.msra.mxu0 %v464
    %509 = vmatprep.subr.mxu0 0.0
    %510 = vmatpush1.msra.mxu0 %v463
    %511 = vmatprep.subr.mxu0 0.0
    %512 = vmatpush1.msra.mxu0 %v462
    %513 = vmatprep.subr.mxu0 0.0
    %514 = vmatpush2.msra.mxu0 0.0
    %515 = vmatprep.subr.mxu0 0.0
    %516 = vmatpush2.msra.mxu0 0.0
    %517 = vmatprep.subr.mxu0 0.0
    %518 = vmatpush2.msra.mxu0 0.0
    %519 = vmatprep.subr.mxu0 0.0
    %520 = vmatpush2.msra.mxu0 0.0
    %521 = vmatprep.subr.mxu0 0.0
    %522 = vmatpush2.msra.mxu0 0.0
    %523 = vmatprep.subr.mxu0 0.0
    %524 = vmatpush2.msra.mxu0 0.0
    %525 = vmatprep.subr.mxu0 0.0
    %526 = vmatpush2.msra.mxu0 0.0
    %527 = vmatprep.subr.mxu0 0.0
    %528 = vmatpush2.msra.mxu0 0.0
    %529 = vmatprep.subr.mxu0 0.0
    %530 = vmatpush2.msra.mxu0 0.0
    %531 = vmatprep.subr.mxu0 0.0
    %532 = vmatpush2.msra.mxu0 0.0
    %533 = vmatprep.subr.mxu0 0.0
    %534 = vmatpush2.msra.mxu0 0.0
    %535 = vmatprep.subr.mxu0 0.0
    %536 = vmatpush2.msra.mxu0 0.0
    %537 = vmatprep.subr.mxu0 0.0
    %538 = vmatpush2.msra.mxu0 0.0
    %539 = vmatprep.subr.mxu0 0.0
    %540 = vmatpush2.msra.mxu0 0.0
    %541 = vmatprep.subr.mxu0 0.0
    %542 = vmatpush2.msra.mxu0 0.0
    %543 = vmatprep.subr.mxu0 0.0
    %544 = vmatpush2.msra.mxu0 0.0
    %545 = vmatprep.mubr.f32.mxu0 0.0
    %546 = vmatmul.mubr.f32.gmra.mxu0 %v479
    %v547 = vpop.f32.mrf.mxu0
    %v548 = vadd.f32 %v477, %v547
    %v549 = vpop.f32.mrf.mxu0
    %550 = vdwg.mxu0
    %v551 = vmul.f32 %v548, %v95
    %v552 = vmul.f32 %v551, %v548
    %v553 = vld [vmem:[%s4] sm:$0xff]
    %v554 = vld [vmem:[%s4 + $0x8] sm:$0xff]
    %v555 = vld [vmem:[%s4 + $0x10] sm:$0xff]
    %v556 = vld [vmem:[%s4 + $0x18] sm:$0x3f]
    %561 = vrot.lane.b32.xlu0 %v553, 127
    %v562 = vpop.permute.xlu0 %561
    %563 = vrot.lane.b32.xlu0 %v554, 127
    %v564 = vpop.permute.xlu0 %563
    %565 = vrot.lane.b32.xlu0 %v555, 127
    %v566 = vpop.permute.xlu0 %565
    %567 = vrot.lane.b32.xlu0 %v556, 127
    %v568 = vpop.permute.xlu0 %567
    %v573 = vsel %vm205, %v552, 0
    %v575 = vsel %vm209, %v568, 0
    %577 = vmatprep.subr.mxu0 0.0
    %578 = vmatpush1.msra.mxu0 0.0
    %579 = vmatprep.subr.mxu0 0.0
    %580 = vmatpush1.msra.mxu0 0.0
    %581 = vmatprep.subr.mxu0 0.0
    %582 = vmatpush1.msra.mxu0 0.0
    %583 = vmatprep.subr.mxu0 0.0
    %584 = vmatpush1.msra.mxu0 0.0
    %585 = vmatprep.subr.mxu0 0.0
    %586 = vmatpush1.msra.mxu0 0.0
    %587 = vmatprep.subr.mxu0 0.0
    %588 = vmatpush1.msra.mxu0 0.0
    %589 = vmatprep.subr.mxu0 0.0
    %590 = vmatpush1.msra.mxu0 0.0
    %591 = vmatprep.subr.mxu0 0.0
    %592 = vmatpush1.msra.mxu0 0.0
    %593 = vmatprep.subr.mxu0 0.0
    %594 = vmatpush1.msra.mxu0 0.0
    %595 = vmatprep.subr.mxu0 0.0
    %596 = vmatpush1.msra.mxu0 0.0
    %597 = vmatprep.subr.mxu0 0.0
    %598 = vmatpush1.msra.mxu0 0.0
    %599 = vmatprep.subr.mxu0 0.0
    %600 = vmatpush1.msra.mxu0 0.0
    %601 = vmatprep.subr.mxu0 0.0
    %602 = vmatpush1.msra.mxu0 %v575
    %603 = vmatprep.subr.mxu0 0.0
    %604 = vmatpush1.msra.mxu0 %v566
    %605 = vmatprep.subr.mxu0 0.0
    %606 = vmatpush1.msra.mxu0 %v564
    %607 = vmatprep.subr.mxu0 0.0
    %608 = vmatpush1.msra.mxu0 %v562
    %609 = vmatprep.subr.mxu0 0.0
    %610 = vmatpush2.msra.mxu0 0.0
    %611 = vmatprep.subr.mxu0 0.0
    %612 = vmatpush2.msra.mxu0 0.0
    %613 = vmatprep.subr.mxu0 0.0
    %614 = vmatpush2.msra.mxu0 0.0
    %615 = vmatprep.subr.mxu0 0.0
    %616 = vmatpush2.msra.mxu0 0.0
    %617 = vmatprep.subr.mxu0 0.0
    %618 = vmatpush2.msra.mxu0 0.0
    %619 = vmatprep.subr.mxu0 0.0
    %620 = vmatpush2.msra.mxu0 0.0
    %621 = vmatprep.subr.mxu0 0.0
    %622 = vmatpush2.msra.mxu0 0.0
    %623 = vmatprep.subr.mxu0 0.0
    %624 = vmatpush2.msra.mxu0 0.0
    %625 = vmatprep.subr.mxu0 0.0
    %626 = vmatpush2.msra.mxu0 0.0
    %627 = vmatprep.subr.mxu0 0.0
    %628 = vmatpush2.msra.mxu0 0.0
    %629 = vmatprep.subr.mxu0 0.0
    %630 = vmatpush2.msra.mxu0 0.0
    %631 = vmatprep.subr.mxu0 0.0
    %632 = vmatpush2.msra.mxu0 0.0
    %633 = vmatprep.subr.mxu0 0.0
    %634 = vmatpush2.msra.mxu0 0.0
    %635 = vmatprep.subr.mxu0 0.0
    %636 = vmatpush2.msra.mxu0 0.0
    %637 = vmatprep.subr.mxu0 0.0
    %638 = vmatpush2.msra.mxu0 0.0
    %639 = vmatprep.subr.mxu0 0.0
    %640 = vmatpush2.msra.mxu0 0.0
    %641 = vmatprep.mubr.f32.mxu0 0.0
    %642 = vmatmul.mubr.f32.gmra.mxu0 %v573
    %v643 = vpop.f32.mrf.mxu0
    %v644 = vadd.f32 0.0, %v643
    %v645 = vpop.f32.mrf.mxu0
    %646 = vdwg.mxu0
    %v647 = vrsqrt.pop %v644
    %v648 = vmul.f32 %v644, %v647
    %vm649 = vcmp.eq.f32.partialorder %v644, inf
    %v650 = vsel %vm649, %v644, %v648
    %vm651 = vcmp.eq.f32.partialorder %v644, 0.0
    %v652 = vand.u32 %v644, 2147483648
    %v653 = vsel %vm651, %v652, %v650
    %v654 = vadd.f32 %v653, 1e-06
    %v655 = vrcp.pop %v654
    %v656 = vmul.f32 1.0, %v655
    %658 = vset.pattern.permute.xlu0 0
    %659 = vperm.xlu0 %658, %v656
    %v660 = vpop.permute.xlu0 %659
    %v662 = vmul.f32 %v551, %v660
    %v663 = vld [vmem:[#allocation7] sm:$0xff]
    %v664 = vld [vmem:[#allocation7 + $0x8] sm:$0xff]
    %v665 = vld [vmem:[#allocation7 + $0x10] sm:$0xff]
    %v666 = vld [vmem:[#allocation7 + $0x18] sm:$0x3f]
    %v667 = vlaneseq
    %v668 = vshrl.u32 %v667, 7
    %v669 = vsub.s32 2, %v668
    %v670 = vrot.slane %v77, %v669
    %v672 = vsel %vm205, %v662, 0
    %v675 = vsel %vm209, %v666, 0
    %677 = vmatprep.subr.mxu0 0.0
    %678 = vmatpush1.msra.mxu0 0.0
    %679 = vmatprep.subr.mxu0 0.0
    %680 = vmatpush1.msra.mxu0 0.0
    %681 = vmatprep.subr.mxu0 0.0
    %682 = vmatpush1.msra.mxu0 0.0
    %683 = vmatprep.subr.mxu0 0.0
    %684 = vmatpush1.msra.mxu0 0.0
    %685 = vmatprep.subr.mxu0 0.0
    %686 = vmatpush1.msra.mxu0 0.0
    %687 = vmatprep.subr.mxu0 0.0
    %688 = vmatpush1.msra.mxu0 0.0
    %689 = vmatprep.subr.mxu0 0.0
    %690 = vmatpush1.msra.mxu0 0.0
    %691 = vmatprep.subr.mxu0 0.0
    %692 = vmatpush1.msra.mxu0 0.0
    %693 = vmatprep.subr.mxu0 0.0
    %694 = vmatpush1.msra.mxu0 0.0
    %695 = vmatprep.subr.mxu0 0.0
    %696 = vmatpush1.msra.mxu0 0.0
    %697 = vmatprep.subr.mxu0 0.0
    %698 = vmatpush1.msra.mxu0 0.0
    %699 = vmatprep.subr.mxu0 0.0
    %700 = vmatpush1.msra.mxu0 0.0
    %701 = vmatprep.subr.mxu0 0.0
    %702 = vmatpush1.msra.mxu0 %v675
    %703 = vmatprep.subr.mxu0 0.0
    %704 = vmatpush1.msra.mxu0 %v665
    %705 = vmatprep.subr.mxu0 0.0
    %706 = vmatpush1.msra.mxu0 %v664
    %707 = vmatprep.subr.mxu0 0.0
    %708 = vmatpush1.msra.mxu0 %v663
    %709 = vmatprep.subr.mxu0 0.0
    %710 = vmatpush2.msra.mxu0 0.0
    %711 = vmatprep.subr.mxu0 0.0
    %712 = vmatpush2.msra.mxu0 0.0
    %713 = vmatprep.subr.mxu0 0.0
    %714 = vmatpush2.msra.mxu0 0.0
    %715 = vmatprep.subr.mxu0 0.0
    %716 = vmatpush2.msra.mxu0 0.0
    %717 = vmatprep.subr.mxu0 0.0
    %718 = vmatpush2.msra.mxu0 0.0
    %719 = vmatprep.subr.mxu0 0.0
    %720 = vmatpush2.msra.mxu0 0.0
    %721 = vmatprep.subr.mxu0 0.0
    %722 = vmatpush2.msra.mxu0 0.0
    %723 = vmatprep.subr.mxu0 0.0
    %724 = vmatpush2.msra.mxu0 0.0
    %725 = vmatprep.subr.mxu0 0.0
    %726 = vmatpush2.msra.mxu0 0.0
    %727 = vmatprep.subr.mxu0 0.0
    %728 = vmatpush2.msra.mxu0 0.0
    %729 = vmatprep.subr.mxu0 0.0
    %730 = vmatpush2.msra.mxu0 0.0
    %731 = vmatprep.subr.mxu0 0.0
    %732 = vmatpush2.msra.mxu0 0.0
    %733 = vmatprep.subr.mxu0 0.0
    %734 = vmatpush2.msra.mxu0 0.0
    %735 = vmatprep.subr.mxu0 0.0
    %736 = vmatpush2.msra.mxu0 0.0
    %737 = vmatprep.subr.mxu0 0.0
    %738 = vmatpush2.msra.mxu0 0.0
    %739 = vmatprep.subr.mxu0 0.0
    %740 = vmatpush2.msra.mxu0 0.0
    %741 = vmatprep.mubr.f32.mxu0 0.0
    %742 = vmatmul.mubr.f32.gmra.mxu0 %v672
    %v743 = vpop.f32.mrf.mxu0
    %v744 = vadd.f32 %v670, %v743
    %v745 = vpop.f32.mrf.mxu0
    %746 = vdwg.mxu0
    %747 = vst.msk [vmem:[#allocation8] sm:$0xff] %vm104, %v744
    // Predicated region
    $region50: #{tpu_custom_call.1} parent=1 // pred_check
      _
    $region51: #{tpu_custom_call.1} parent=1 // pred_check_branch
      %749 = sbr.rel (0) target = $region53
    $region52: #{tpu_custom_call.1} parent=1 // pred_region
      %s751 = ssub.s32 128, 128
      %752 = vsyncadd [#allocation4], %s751
      %s754 = sshll.u32 [#allocation8], 4
      %s755 = int_to_ptr.vmem [resolvable:$true] %s754
      %757 = dma.vmem_to_hbm [thread:$0]  %s755, 128, %s9, [#allocation4]
    $region53: #{tpu_custom_call.1} parent=1 // pred_fallthru
      _
    // Predicated region
    $region54: #{tpu_custom_call.1} parent=1 // pred_check
      _
    $region55: #{tpu_custom_call.1} parent=1 // pred_check_branch
      %759 = sbr.rel (0) target = $region57
    $region56: #{tpu_custom_call.1} parent=1 // pred_region
      _
    $region57: #{tpu_custom_call.1} parent=1 // pred_fallthru
      _
    // Predicated region
    $region58: #{tpu_custom_call.1} parent=1 // pred_check
      _
    $region59: #{tpu_custom_call.1} parent=1 // pred_check_branch
      %761 = sbr.rel (0) target = $region61
    $region60: #{tpu_custom_call.1} parent=1 // pred_region
      %762 = dma.done [#allocation4], 128
    $region61: #{tpu_custom_call.1} parent=1 // pred_fallthru
      _
    // Predicated region
    $region62: #{tpu_custom_call.1} parent=1 // pred_check
      _
    $region63: #{tpu_custom_call.1} parent=1 // pred_check_branch
      %764 = sbr.rel (0) target = $region65
    $region64: #{tpu_custom_call.1} parent=1 // pred_region
      _
    $region65: #{tpu_custom_call.1} parent=1 // pred_fallthru
      _
    %765 = vsyncpa [#allocation3], 1
    %766 = vsyncpa [#allocation6], 1
    %767 = vsyncpa [#allocation4], 1

</llo_original>
